<compile_context>
chip_gen: v5e
topology: v5e:2x2
jax: 0.10.0
libtpu: 0.0.40
codegen_flags: <defaults>
</compile_context>

<pallas_src>
import functools

import jax
import jax.numpy as jnp
from jax.experimental import pallas as pl
from jax.experimental.pallas import tpu as pltpu

_LANE = 128


def _fused_conv_kernel(x_ref, w_ref, o_ref, *, row_starts, out_h):
    """One batch element: a single MXU matmul covering all k*k taps + bias.

    x_ref: (1, R, slab_w)            padded NHWC rows, lanes padded to a 128
                                     multiple; lane[Wp*C_in] == 1.0 (bias lane)
                                     (bf16; rows de-interleaved if stride>1)
    w_ref: (k*slab_w, out_w*C_out)   per-vertical-tap weight slabs stacked on
                                     K; horizontal taps + stride folded into
                                     the row placement; bias folded into the
                                     slab-0 bias-lane row (bf16)
    o_ref: (1, out_h, out_w*C_out)   lane-dense output (f32)
    """
    # k row-shifted, unit-stride views of the same VMEM block, concatenated
    # along lanes (each slab is a 128-lane multiple -> vreg-aligned concat).
    slabs = [x_ref[0, pl.ds(r0, out_h), :] for r0 in row_starts]
    lhs = jnp.concatenate(slabs, axis=-1)              # (out_h, k*slab_w)
    # One MXU push per image; the bias rides along via the ones-lane, so the
    # store comes straight off the accumulator (no epilogue VPU add).
    o_ref[0] = jnp.dot(lhs, w_ref[...], preferred_element_type=jnp.float32)


def prepare_conv_params(weight, bias, *, kernel_size, padding, stride,
                        height, width):
    """Build the packed (k*slab_w, out_w*C_out) weight once, outside the
    per-call path.  weight: (C_out, C_in, k, k); bias: (C_out,)."""
    C_out, C_in = weight.shape[0], weight.shape[1]
    k, s, p = kernel_size, stride, padding
    Wp = width + 2 * p
    out_w = (width + 2 * p - k) // s + 1
    n_in = Wp * C_in
    # Reserve at least one padding lane for the bias ("ones") lane.
    slab_w = ((n_in + 1 + _LANE - 1) // _LANE) * _LANE
    n_lanes = out_w * C_out

    # w_u[u, c*C_in+ic, j*C_out+oc] = weight[oc, ic, u, v]  where c == j*s + v.
    w_kk = jnp.transpose(weight, (2, 3, 1, 0))          # (k_u, k_v, C_in, C_out)
    place = (jnp.arange(Wp)[None, None, :] ==
             (jnp.arange(out_w)[None, :, None] * s
              + jnp.arange(k)[:, None, None])).astype(weight.dtype)  # (v, j, c)
    w_u = jnp.einsum("vjc,uvio->ucijo", place, w_kk).reshape(k, n_in, n_lanes)
    w_u = jnp.pad(w_u, ((0, 0), (0, slab_w - n_in), (0, 0)))
    # Bias folded into the matmul: LHS ones-lane (index n_in) times this row.
    w_u = w_u.at[0, n_in, :].set(jnp.tile(bias, out_w).astype(weight.dtype))
    return w_u.reshape(k * slab_w, n_lanes).astype(jnp.bfloat16)


@functools.partial(jax.jit, static_argnames=("kernel_size", "padding", "stride"))
def my_conv2d(x, w_full, *, kernel_size, padding=0, stride=1):
    """x: (B, C_in, H, W); w_full: packed weights from prepare_conv_params.
    Returns (B, C_out, out_H, out_W) float32 (module's NCHW contract)."""
    B, C_in, H, W = x.shape
    k, s, p = kernel_size, stride, padding
    out_h = (H + 2 * p - k) // s + 1
    out_w = (W + 2 * p - k) // s + 1
    Hp, Wp = H + 2 * p, W + 2 * p
    n_in = Wp * C_in
    slab_w = w_full.shape[0] // k
    n_lanes = w_full.shape[1]
    C_out = n_lanes // out_w

    # ---- per-call glue: one cheap layout pass over the (small) input --------
    x_nhwc = jnp.transpose(x, (0, 2, 3, 1))
    x_nhwc = jnp.pad(x_nhwc, ((0, 0), (p, p), (p, p), (0, 0)))
    x2d = x_nhwc.reshape(B, Hp, n_in)
    x2d = jnp.pad(x2d, ((0, 0), (0, 0), (0, slab_w - n_in)))
    x2d = x2d.at[:, :, n_in].set(1.0)                  # ones-lane -> bias row
    x2d = x2d.astype(jnp.bfloat16)

    if s == 1:
        row_starts = tuple(range(k))
        n_rows = Hp
    else:
        # De-interleave rows by residue mod s so the kernel only does
        # unit-stride sublane reads: original row q*s + r  ->  row r*Hq + q.
        Hq = -(-Hp // s)
        x2d = jnp.pad(x2d, ((0, 0), (0, Hq * s - Hp), (0, 0)))
        x2d = (x2d.reshape(B, Hq, s, slab_w)
                  .transpose(0, 2, 1, 3)
                  .reshape(B, s * Hq, slab_w))
        row_starts = tuple((u % s) * Hq + u // s for u in range(k))
        n_rows = s * Hq

    flops = 2 * B * out_h * (k * slab_w) * n_lanes
    bytes_accessed = x2d.size * 2 + w_full.size * 2 + B * out_h * n_lanes * 4

    kernel = functools.partial(_fused_conv_kernel,
                               row_starts=row_starts, out_h=out_h)

    out2d = pl.pallas_call(
        kernel,
        out_shape=jax.ShapeDtypeStruct((B, out_h, n_lanes), jnp.float32),
        grid_spec=pltpu.PrefetchScalarGridSpec(
            num_scalar_prefetch=0,
            grid=(B,),
            in_specs=[
                pl.BlockSpec((1, n_rows, slab_w), lambda b: (b, 0, 0)),
                pl.BlockSpec((k * slab_w, n_lanes), lambda b: (0, 0)),
            ],
            out_specs=pl.BlockSpec((1, out_h, n_lanes), lambda b: (b, 0, 0)),
        ),
        compiler_params=pltpu.CompilerParams(
            dimension_semantics=("parallel",)),
        cost_estimate=pl.CostEstimate(flops=flops, transcendentals=0,
                                      bytes_accessed=bytes_accessed),
    )(x2d, w_full)

    out = out2d.reshape(B, out_h, out_w, C_out)        # NHWC
    return jnp.transpose(out, (0, 3, 1, 2))            # NCHW (module contract)


if __name__ == "__main__":
    # Shapes consistent with the module: batch=2, in_channels=4, 16x16 spatial,
    # out_channels=8, kernel=3.
    B, C_in, H, W = 2, 4, 16, 16
    C_out, ksz = 8, 3

    key = jax.random.PRNGKey(0)
    kx, kw, kb = jax.random.split(key, 3)
    x = jax.random.normal(kx, (B, C_in, H, W), dtype=jnp.float32)
    weight = jax.random.normal(kw, (C_out, C_in, ksz, ksz), dtype=jnp.float32) * 0.01
    bias = jax.random.normal(kb, (C_out,), dtype=jnp.float32) * 0.1

    def ref_conv(x, weight, bias, pad, stride):
        return jax.lax.conv_general_dilated(
            x, weight, window_strides=(stride, stride),
            padding=((pad, pad), (pad, pad)),
            dimension_numbers=("NCHW", "OIHW", "NCHW"),
        ) + bias.reshape(1, -1, 1, 1)

    # Case 1: padding=1, stride=1 (lane-dense 128-wide output blocks).
    pad1, stride1 = 1, 1
    w_full1 = prepare_conv_params(weight, bias, kernel_size=ksz, padding=pad1,
                                  stride=stride1, height=H, width=W)
    out1 = my_conv2d(x, w_full1, kernel_size=ksz, padding=pad1, stride=stride1)
    out1 = jax.block_until_ready(out1)
    ref1 = ref_conv(x, weight, bias, pad1, stride1)
    assert out1.shape == (B, C_out, H, W)
    # bf16 inputs with f32 accumulation: tolerance relaxed vs pure-f32.
    assert jnp.allclose(out1, ref1, atol=1e-2, rtol=1e-2)

    # Case 2: padding=0, stride=2 (exercises the de-interleaved stride path
    # that the review flagged as previously untested).
    pad2, stride2 = 0, 2
    w_full2 = prepare_conv_params(weight, bias, kernel_size=ksz, padding=pad2,
                                  stride=stride2, height=H, width=W)
    out2 = my_conv2d(x, w_full2, kernel_size=ksz, padding=pad2, stride=stride2)
    out2 = jax.block_until_ready(out2)
    ref2 = ref_conv(x, weight, bias, pad2, stride2)
    assert out2.shape == ref2.shape
    assert jnp.allclose(out2, ref2, atol=1e-2, rtol=1e-2)

    print("KERNEL_OK")
</pallas_src>

<mosaic_0001>
module attributes {stable_mosaic.version = 11 : i64} {
  func.func @_fused_conv_kernel(%arg0: i32, %arg1: memref<1x18x128xbf16, #tpu.memory_space<vmem>>, %arg2: memref<384x128xbf16, #tpu.memory_space<vmem>>, %arg3: memref<1x16x128xf32, #tpu.memory_space<vmem>>) attributes {dimension_semantics = [#tpu.dimension_semantics<parallel>], iteration_bounds = array<i64: 2>, scalar_prefetch = 0 : i64, scratch_operands = 0 : i64, tpu.core_type = #tpu.core_type<tc>, window_params = [{transform_indices = @transform_0, window_bounds = array<i64: 1, 18, 128>}, {pipeline_mode = #tpu.pipeline_mode<synchronous>, transform_indices = @transform_1, window_bounds = array<i64: 384, 128>}, {transform_indices = @transform_2, window_bounds = array<i64: 1, 16, 128>}]} {
    %c0 = arith.constant 0 : index
    %c0_0 = arith.constant 0 : index
    %c0_1 = arith.constant 0 : index
    %0 = vector.load %arg1[%c0, %c0_0, %c0_1] : memref<1x18x128xbf16, #tpu.memory_space<vmem>>, vector<1x16x128xbf16>
    %1 = vector.shape_cast %0 : vector<1x16x128xbf16> to vector<16x128xbf16>
    %c0_2 = arith.constant 0 : index
    %c1 = arith.constant 1 : index
    %c0_3 = arith.constant 0 : index
    %2 = vector.load %arg1[%c0_2, %c1, %c0_3] : memref<1x18x128xbf16, #tpu.memory_space<vmem>>, vector<1x16x128xbf16>
    %3 = vector.shape_cast %2 : vector<1x16x128xbf16> to vector<16x128xbf16>
    %c0_4 = arith.constant 0 : index
    %c2 = arith.constant 2 : index
    %c0_5 = arith.constant 0 : index
    %4 = vector.load %arg1[%c0_4, %c2, %c0_5] : memref<1x18x128xbf16, #tpu.memory_space<vmem>>, vector<1x16x128xbf16>
    %5 = vector.shape_cast %4 : vector<1x16x128xbf16> to vector<16x128xbf16>
    %6 = tpu.concatenate %1, %3, %5 in 1 : vector<16x128xbf16>, vector<16x128xbf16>, vector<16x128xbf16> -> vector<16x384xbf16>
    %c0_6 = arith.constant 0 : index
    %c0_7 = arith.constant 0 : index
    %7 = vector.load %arg2[%c0_6, %c0_7] : memref<384x128xbf16, #tpu.memory_space<vmem>>, vector<384x128xbf16>
    %cst = arith.constant dense<0.000000e+00> : vector<16x128xf32>
    %8 = tpu.matmul %6, %7, %cst {dimension_numbers = #tpu.dot_dimension_numbers<[1], [0], [0], [1], [0, 0, 1, 1], [], []>} : vector<16x384xbf16>, vector<384x128xbf16>, vector<16x128xf32> -> vector<16x128xf32>
    %c0_8 = arith.constant 0 : index
    %c0_9 = arith.constant 0 : index
    %c0_10 = arith.constant 0 : index
    %9 = vector.load %arg3[%c0_8, %c0_9, %c0_10] : memref<1x16x128xf32, #tpu.memory_space<vmem>>, vector<1x16x128xf32>
    %10 = vector.shape_cast %9 : vector<1x16x128xf32> to vector<16x128xf32>
    %11 = vector.shape_cast %8 : vector<16x128xf32> to vector<1x16x128xf32>
    tpu.vector_store %arg3[%c0_8, %c0_9, %c0_10], %11 {strides = array<i32>} : memref<1x16x128xf32, #tpu.memory_space<vmem>>, vector<1x16x128xf32>,
    return
  }
  func.func @transform_0(%arg0: i32) -> (i32, i32, i32) {
    %c0_i32 = arith.constant 0 : i32
    %c0_i32_0 = arith.constant 0 : i32
    %c0_i32_1 = arith.constant 0 : i32
    return %arg0, %c0_i32, %c0_i32_0 : i32, i32, i32
  }
  func.func @transform_1(%arg0: i32) -> (i32, i32) {
    %c0_i32 = arith.constant 0 : i32
    %c0_i32_0 = arith.constant 0 : i32
    %c0_i32_1 = arith.constant 0 : i32
    return %c0_i32, %c0_i32_0 : i32, i32
  }
  func.func @transform_2(%arg0: i32) -> (i32, i32, i32) {
    %c0_i32 = arith.constant 0 : i32
    %c0_i32_0 = arith.constant 0 : i32
    %c0_i32_1 = arith.constant 0 : i32
    return %arg0, %c0_i32, %c0_i32_0 : i32, i32, i32
  }
}

</mosaic_0001>

<llo_original>
// kernel: my_conv2d.1
$region0: #{my_conv2d.1}
  #allocation0 [shape = 'u32[]', space=smem, size = 0x4, offset = 0x4, fixed_abs, tag = 'smem constant byte address 0x4 - core index']
  #allocation1 [shape = 'u32[72,128]{1,0:T(1,128)}', space=vmem, size = 0x9000, scoped, tag = 'internal scratch']
  %s0 = inlined_call_operand.vmem [shape: bf16[2,18,128], index: 0, kind: input, shape index: {}]
  %s1 = inlined_call_operand.vmem [shape: bf16[384,128], index: 1, kind: input, shape index: {}]
  %s2 = inlined_call_operand.vmem [shape: f32[2,16,128], index: 2, kind: output, shape index: {}]
  %s3 = sld [smem:[#allocation0]]
  $region41: #{my_conv2d.1} parent=0
    _
  %s5 = ssub.s32 1, %s3
  %s6 = scalar_select 0, %s5, %s3
  loop: start=0, step=1, limit=4
  $region2: #{my_conv2d.1} parent=0 // loop_pre_header
    _
  $region3: #{my_conv2d.1} parent=0 // loop_header
    %s8 = sphi 0, %s12
    %p9 = scmp.ge.s32.totalorder %s8, 4
    %s18 = sphi 0, %s20
    %s21 = sphi 0, %s18
    %s22 = sphi 0, %s21
    %s38 = sphi 0, %s22
    %s42 = sphi 0, %s42
    %s44 = sphi 0, %s42
    %s45 = sphi 0, %s44
    %s59 = sphi 0, %s45
    %s65 = sphi 0, %s67
    %s68 = sphi 0, %s65
    %s69 = sphi 0, %s68
    %s85 = sphi 0, %s69
  $region4: #{my_conv2d.1} parent=0 // loop_header_branch
    %11 = sbr.rel (%p9) target = $region8
  $region5: #{my_conv2d.1} parent=0 // loop_body
    %s13 = ssub.s32 %s8, 1
    %s14 = ssub.s32 %s8, 2
    %s15 = sadd.s32 %s8, 1
    %s16 = ssub.s32 %s8, %s15
    %p17 = scmp.eq.s32.totalorder %s16, 0
    %s19 = sadd.s32 %s18, 1
    %s20 = scalar_select %p17, %s18, %s19
    %p23 = pneg %p17
    %p24 = scmp.eq.s32.totalorder %s8, 1
    %p25 = por %p23, %p24
    %p26 = scmp.ne.s32.totalorder %s18, %s21
    %p27 = scmp.eq.s32.totalorder %s8, 0
    %p28 = por %p26, %p27
    %p29 = scmp.ne.s32.totalorder %s18, %s21
    %p30 = scmp.eq.s32.totalorder %s13, 1
    %p31 = por %p29, %p30
    %p32 = scmp.ne.s32.totalorder %s21, %s22
    %p33 = scmp.eq.s32.totalorder %s13, 0
    %p34 = por %p32, %p33
    %p35 = scmp.ne.s32.totalorder %s21, %s22
    %p36 = scmp.eq.s32.totalorder %s14, 1
    %p37 = por %p35, %p36
    %p39 = scmp.ne.s32.totalorder %s22, %s38
    %p40 = scmp.eq.s32.totalorder %s14, 0
    %p41 = por %p39, %p40
    %s43 = sadd.s32 %s42, 1
    %p46 = scmp.eq.s32.totalorder %s8, 1
    %p47 = scmp.ne.s32.totalorder %s42, %s44
    %p48 = scmp.eq.s32.totalorder %s8, 0
    %p49 = por %p47, %p48
    %p50 = scmp.ne.s32.totalorder %s42, %s44
    %p51 = scmp.eq.s32.totalorder %s13, 1
    %p52 = por %p50, %p51
    %p53 = scmp.ne.s32.totalorder %s44, %s45
    %p54 = scmp.eq.s32.totalorder %s13, 0
    %p55 = por %p53, %p54
    %p56 = scmp.ne.s32.totalorder %s44, %s45
    %p57 = scmp.eq.s32.totalorder %s14, 1
    %p58 = por %p56, %p57
    %p60 = scmp.ne.s32.totalorder %s45, %s59
    %p61 = scmp.eq.s32.totalorder %s14, 0
    %p62 = por %p60, %p61
    %s63 = ssub.s32 %s8, %s15
    %p64 = scmp.eq.s32.totalorder %s63, 0
    %s66 = sadd.s32 %s65, 1
    %s67 = scalar_select %p64, %s65, %s66
    %p70 = pneg %p64
    %p71 = scmp.eq.s32.totalorder %s8, 1
    %p72 = por %p70, %p71
    %p73 = scmp.ne.s32.totalorder %s65, %s68
    %p74 = scmp.eq.s32.totalorder %s8, 0
    %p75 = por %p73, %p74
    %p76 = scmp.ne.s32.totalorder %s65, %s68
    %p77 = scmp.eq.s32.totalorder %s13, 1
    %p78 = por %p76, %p77
    %p79 = scmp.ne.s32.totalorder %s68, %s69
    %p80 = scmp.eq.s32.totalorder %s13, 0
    %p81 = por %p79, %p80
    %p82 = scmp.ne.s32.totalorder %s68, %s69
    %p83 = scmp.eq.s32.totalorder %s14, 1
    %p84 = por %p82, %p83
    %p86 = scmp.ne.s32.totalorder %s69, %s85
    %p87 = scmp.eq.s32.totalorder %s14, 0
    %p88 = por %p86, %p87
    %p89 = scmp.le.s32.totalorder 1, %s8
    %p90 = scmp.lt.s32.totalorder %s8, 3
    %p91 = pnand %p89, %p90
    %p92 = pneg %p91
    // Predicated region
    $region9: #{my_conv2d.1} parent=5 // pred_check
      _
    $region10: #{my_conv2d.1} parent=5 // pred_check_branch
      %94 = sbr.rel (%p91) target = $region12
    $region11: #{my_conv2d.1} parent=5 // pred_region
      %s95 = ssub.s32 %s8, 1
      // Predicated region
      $region13: #{my_conv2d.1} parent=11 // pred_check
        %p96 = pneg %p55
      $region14: #{my_conv2d.1} parent=11 // pred_check_branch
        %98 = sbr.rel (%p96) target = $region16
      $region15: #{my_conv2d.1} parent=11 // pred_region
        _
      $region16: #{my_conv2d.1} parent=11 // pred_fallthru
        _
    $region12: #{my_conv2d.1} parent=5 // pred_fallthru
      _
    %p99 = scmp.lt.s32.totalorder %s8, 2
    // Predicated region
    $region17: #{my_conv2d.1} parent=5 // pred_check
      %p100 = pneg %p99
    $region18: #{my_conv2d.1} parent=5 // pred_check_branch
      %102 = sbr.rel (%p100) target = $region20
    $region19: #{my_conv2d.1} parent=5 // pred_region
      // Predicated region
      $region21: #{my_conv2d.1} parent=19 // pred_check
        %p103 = pneg %p28
      $region22: #{my_conv2d.1} parent=19 // pred_check_branch
        %105 = sbr.rel (%p103) target = $region24
      $region23: #{my_conv2d.1} parent=19 // pred_region
        %p106 = scmp.lt.s32.totalorder %s8, 1
        %s107 = scalar_select %p106, %s8, 1
        %s108 = smul.addr %s107, 3
        %s109 = smul.addr %s108, 4
        %s110 = scalar_lea.vmem %s0, %s109
      $region24: #{my_conv2d.1} parent=19 // pred_fallthru
        _
    $region20: #{my_conv2d.1} parent=5 // pred_fallthru
      _
    %p111 = scmp.le.s32.totalorder 1, %s8
    %p112 = scmp.lt.s32.totalorder %s8, 3
    %p113 = pnand %p111, %p112
    %p114 = pneg %p113
    // Predicated region
    $region25: #{my_conv2d.1} parent=5 // pred_check
      _
    $region26: #{my_conv2d.1} parent=5 // pred_check_branch
      %116 = sbr.rel (%p113) target = $region28
    $region27: #{my_conv2d.1} parent=5 // pred_region
      %s117 = ssub.s32 %s8, 1
      %p118 = scmp.lt.s32.totalorder %s13, 1
      %s119 = scalar_select %p118, %s13, 1
      %s120 = smul.addr %s119, 3
      %s121 = smul.addr %s120, 4
      %s122 = scalar_lea.vmem %s0, %s121
      %p123 = pneg %p34
      %p124 = pneg %p31
      %p125 = pneg %p55
      %p126 = pneg %p52
      %p127 = pneg %p81
      %p128 = pneg %p78
      %p129 = scmp.lt.s32.totalorder %s13, 1
      %s130 = scalar_select %p129, %s13, 1
      %s131 = smul.addr %s130, 2
      %s132 = smul.addr %s131, 8
      %s133 = scalar_lea.vmem %s2, %s132
      %p134 = scmp.lt.s32.totalorder %s13, 1
      %s135 = scalar_select %p134, %s13, 1
      %s136 = smul.addr %s135, 3
      %s137 = smul.addr %s136, 4
      %s138 = scalar_lea.vmem %s0, %s137
      %p139 = scmp.lt.s32.totalorder %s13, 1
      %s140 = scalar_select %p139, %s13, 1
      %s141 = smul.addr %s140, 2
      %s142 = smul.addr %s141, 8
      %s143 = scalar_lea.vmem %s2, %s142
      %v144 = vld [vmem:[%s138] sm:$0xf]
      %v145 = vld [vmem:[%s138 + $0x4] sm:$0xf]
      %v146 = vld [vmem:[%s138 + $0x8] sm:$0x1]
      %v147 = vld [vmem:[%s138] sm:$0xe]
      %v150 = vunpack.c.l.b16 %v144
      %v151 = vunpack.c.l.b16 %v145
      %v152 = vpack.c.b16 %v151, %v150
      %v155 = vunpack.c.l.b16 %v146
      %v156 = vpack.c.b16 %v155, %v155
      %vm157 = vsmask.f32 7424
      %v159 = vshrl.u32 %v152, 16
      %v161 = vshll.u32 %v152, 16
      %v163 = vrot.slane %v161, 1
      %v164 = vor.u32 %v159, %v163
      %v166 = vshll.u32 %v156, 16
      %v168 = vrot.slane %v166, 1
      %v169 = vsel %vm157, %v164, %v168
      %v172 = vunpack.c.l.b16 %v147
      %v173 = vpack.c.b16 %v151, %v172
      %vm174 = vcmask 1046528
      %v175 = vrot.slane %v173, 1
      %v176 = vrot.slane %v156, 1
      %v177 = vsel %vm174, %v175, %v176
      %v179 = vld [vmem:[%s1] sm:$0xf]
      %v180 = vld [vmem:[%s1 + $0x4] sm:$0xf]
      %v181 = vld [vmem:[%s1 + $0x8] sm:$0xf]
      %v182 = vld [vmem:[%s1 + $0xc] sm:$0xf]
      %v183 = vld [vmem:[%s1 + $0x10] sm:$0xf]
      %v184 = vld [vmem:[%s1 + $0x14] sm:$0xf]
      %v185 = vld [vmem:[%s1 + $0x18] sm:$0xf]
      %v186 = vld [vmem:[%s1 + $0x1c] sm:$0xf]
      %v187 = vld [vmem:[%s1 + $0x20] sm:$0xf]
      %v188 = vld [vmem:[%s1 + $0x24] sm:$0xf]
      %v189 = vld [vmem:[%s1 + $0x28] sm:$0xf]
      %v190 = vld [vmem:[%s1 + $0x2c] sm:$0xf]
      %v191 = vld [vmem:[%s1 + $0x30] sm:$0xf]
      %v192 = vld [vmem:[%s1 + $0x34] sm:$0xf]
      %v193 = vld [vmem:[%s1 + $0x38] sm:$0xf]
      %v194 = vld [vmem:[%s1 + $0x3c] sm:$0xf]
      %v195 = vld [vmem:[%s1 + $0x40] sm:$0xf]
      %v196 = vld [vmem:[%s1 + $0x44] sm:$0xf]
      %v197 = vld [vmem:[%s1 + $0x48] sm:$0xf]
      %v198 = vld [vmem:[%s1 + $0x4c] sm:$0xf]
      %v199 = vld [vmem:[%s1 + $0x50] sm:$0xf]
      %v200 = vld [vmem:[%s1 + $0x54] sm:$0xf]
      %v201 = vld [vmem:[%s1 + $0x58] sm:$0xf]
      %v202 = vld [vmem:[%s1 + $0x5c] sm:$0xf]
      %v203 = vld [vmem:[%s1 + $0x60] sm:$0xf]
      %v204 = vld [vmem:[%s1 + $0x64] sm:$0xf]
      %v205 = vld [vmem:[%s1 + $0x68] sm:$0xf]
      %v206 = vld [vmem:[%s1 + $0x6c] sm:$0xf]
      %v207 = vld [vmem:[%s1 + $0x70] sm:$0xf]
      %v208 = vld [vmem:[%s1 + $0x74] sm:$0xf]
      %v209 = vld [vmem:[%s1 + $0x78] sm:$0xf]
      %v210 = vld [vmem:[%s1 + $0x7c] sm:$0xf]
      %v211 = vld [vmem:[%s1 + $0x80] sm:$0xf]
      %v212 = vld [vmem:[%s1 + $0x84] sm:$0xf]
      %v213 = vld [vmem:[%s1 + $0x88] sm:$0xf]
      %v214 = vld [vmem:[%s1 + $0x8c] sm:$0xf]
      %v215 = vld [vmem:[%s1 + $0x90] sm:$0xf]
      %v216 = vld [vmem:[%s1 + $0x94] sm:$0xf]
      %v217 = vld [vmem:[%s1 + $0x98] sm:$0xf]
      %v218 = vld [vmem:[%s1 + $0x9c] sm:$0xf]
      %v219 = vld [vmem:[%s1 + $0xa0] sm:$0xf]
      %v220 = vld [vmem:[%s1 + $0xa4] sm:$0xf]
      %v221 = vld [vmem:[%s1 + $0xa8] sm:$0xf]
      %v222 = vld [vmem:[%s1 + $0xac] sm:$0xf]
      %v223 = vld [vmem:[%s1 + $0xb0] sm:$0xf]
      %v224 = vld [vmem:[%s1 + $0xb4] sm:$0xf]
      %v225 = vld [vmem:[%s1 + $0xb8] sm:$0xf]
      %v226 = vld [vmem:[%s1 + $0xbc] sm:$0xf]
      %v275 = vunpack.c.l.b16 %v179
      %v276 = vunpack.c.l.b16 %v180
      %v277 = vunpack.c.l.b16 %v181
      %v278 = vunpack.c.l.b16 %v182
      %v279 = vunpack.c.l.b16 %v183
      %v280 = vunpack.c.l.b16 %v184
      %v281 = vunpack.c.l.b16 %v185
      %v282 = vunpack.c.l.b16 %v186
      %v283 = vunpack.c.l.b16 %v187
      %v284 = vunpack.c.l.b16 %v188
      %v285 = vunpack.c.l.b16 %v189
      %v286 = vunpack.c.l.b16 %v190
      %v287 = vunpack.c.l.b16 %v191
      %v288 = vunpack.c.l.b16 %v192
      %v289 = vunpack.c.l.b16 %v193
      %v290 = vunpack.c.l.b16 %v194
      %v291 = vunpack.c.l.b16 %v195
      %v292 = vunpack.c.l.b16 %v196
      %v293 = vunpack.c.l.b16 %v197
      %v294 = vunpack.c.l.b16 %v198
      %v295 = vunpack.c.l.b16 %v199
      %v296 = vunpack.c.l.b16 %v200
      %v297 = vunpack.c.l.b16 %v201
      %v298 = vunpack.c.l.b16 %v202
      %v299 = vunpack.c.l.b16 %v203
      %v300 = vunpack.c.l.b16 %v204
      %v301 = vunpack.c.l.b16 %v205
      %v302 = vunpack.c.l.b16 %v206
      %v303 = vunpack.c.l.b16 %v207
      %v304 = vunpack.c.l.b16 %v208
      %v305 = vunpack.c.l.b16 %v209
      %v306 = vunpack.c.l.b16 %v210
      %v307 = vunpack.c.l.b16 %v211
      %v308 = vunpack.c.l.b16 %v212
      %v309 = vunpack.c.l.b16 %v213
      %v310 = vunpack.c.l.b16 %v214
      %v311 = vunpack.c.l.b16 %v215
      %v312 = vunpack.c.l.b16 %v216
      %v313 = vunpack.c.l.b16 %v217
      %v314 = vunpack.c.l.b16 %v218
      %v315 = vunpack.c.l.b16 %v219
      %v316 = vunpack.c.l.b16 %v220
      %v317 = vunpack.c.l.b16 %v221
      %v318 = vunpack.c.l.b16 %v222
      %v319 = vunpack.c.l.b16 %v223
      %v320 = vunpack.c.l.b16 %v224
      %v321 = vunpack.c.l.b16 %v225
      %v322 = vunpack.c.l.b16 %v226
      %v323 = vpack.c.b16 %v276, %v275
      %v324 = vpack.c.b16 %v278, %v277
      %v325 = vpack.c.b16 %v280, %v279
      %v326 = vpack.c.b16 %v282, %v281
      %v327 = vpack.c.b16 %v284, %v283
      %v328 = vpack.c.b16 %v286, %v285
      %v329 = vpack.c.b16 %v288, %v287
      %v330 = vpack.c.b16 %v290, %v289
      %v331 = vpack.c.b16 %v292, %v291
      %v332 = vpack.c.b16 %v294, %v293
      %v333 = vpack.c.b16 %v296, %v295
      %v334 = vpack.c.b16 %v298, %v297
      %v335 = vpack.c.b16 %v300, %v299
      %v336 = vpack.c.b16 %v302, %v301
      %v337 = vpack.c.b16 %v304, %v303
      %v338 = vpack.c.b16 %v306, %v305
      %v339 = vpack.c.b16 %v308, %v307
      %v340 = vpack.c.b16 %v310, %v309
      %v341 = vpack.c.b16 %v312, %v311
      %v342 = vpack.c.b16 %v314, %v313
      %v343 = vpack.c.b16 %v316, %v315
      %v344 = vpack.c.b16 %v318, %v317
      %v345 = vpack.c.b16 %v320, %v319
      %v346 = vpack.c.b16 %v322, %v321
      %371 = vmatpush.bf16.msra.mxu0 %v330
      %372 = vmatpush.bf16.msra.mxu0 %v329
      %373 = vmatpush.bf16.msra.mxu0 %v328
      %374 = vmatpush.bf16.msra.mxu0 %v327
      %375 = vmatpush.bf16.msra.mxu0 %v326
      %376 = vmatpush.bf16.msra.mxu0 %v325
      %377 = vmatpush.bf16.msra.mxu0 %v324
      %378 = vmatpush.bf16.msra.mxu0 %v323
      %379 = vmatmul.bf16.gmra.mxu0 %v152
      %v380 = vpop.f32.mrf.mxu0
      %v381 = vadd.f32 0.0, %v380
      %v382 = vpop.f32.mrf.mxu0
      %v383 = vadd.f32 0.0, %v382
      %384 = vdwg.mxu0
      %385 = vmatpush.bf16.msra.mxu0 %v338
      %386 = vmatpush.bf16.msra.mxu0 %v337
      %387 = vmatpush.bf16.msra.mxu0 %v336
      %388 = vmatpush.bf16.msra.mxu0 %v335
      %389 = vmatpush.bf16.msra.mxu0 %v334
      %390 = vmatpush.bf16.msra.mxu0 %v333
      %391 = vmatpush.bf16.msra.mxu0 %v332
      %392 = vmatpush.bf16.msra.mxu0 %v331
      %393 = vmatmul.bf16.gmra.mxu0 %v169
      %v394 = vpop.f32.mrf.mxu0
      %v395 = vadd.f32 %v381, %v394
      %v396 = vpop.f32.mrf.mxu0
      %v397 = vadd.f32 %v383, %v396
      %398 = vdwg.mxu0
      %399 = vmatpush.bf16.msra.mxu0 %v346
      %400 = vmatpush.bf16.msra.mxu0 %v345
      %401 = vmatpush.bf16.msra.mxu0 %v344
      %402 = vmatpush.bf16.msra.mxu0 %v343
      %403 = vmatpush.bf16.msra.mxu0 %v342
      %404 = vmatpush.bf16.msra.mxu0 %v341
      %405 = vmatpush.bf16.msra.mxu0 %v340
      %406 = vmatpush.bf16.msra.mxu0 %v339
      %407 = vmatmul.bf16.gmra.mxu0 %v177
      %v408 = vpop.f32.mrf.mxu0
      %v409 = vadd.f32 %v395, %v408
      %v410 = vpop.f32.mrf.mxu0
      %v411 = vadd.f32 %v397, %v410
      %412 = vdwg.mxu0
      %413 = vst [vmem:[%s143] sm:$0xff] %v409
      %414 = vst [vmem:[%s143 + $0x8] sm:$0xff] %v411
      %p415 = scmp.lt.s32.totalorder %s13, 1
      %s416 = scalar_select %p415, %s13, 1
      %s417 = smul.addr %s416, 2
      %s418 = smul.addr %s417, 8
      %s419 = scalar_lea.vmem %s2, %s418
      // Predicated region
      $region29: #{my_conv2d.1} parent=27 // pred_check
        %p420 = pneg %p78
      $region30: #{my_conv2d.1} parent=27 // pred_check_branch
        %422 = sbr.rel (%p420) target = $region32
      $region31: #{my_conv2d.1} parent=27 // pred_region
        _
      $region32: #{my_conv2d.1} parent=27 // pred_fallthru
        _
    $region28: #{my_conv2d.1} parent=5 // pred_fallthru
      _
    %p423 = scmp.le.s32.totalorder 2, %s8
    // Predicated region
    $region33: #{my_conv2d.1} parent=5 // pred_check
      %p424 = pneg %p423
    $region34: #{my_conv2d.1} parent=5 // pred_check_branch
      %426 = sbr.rel (%p424) target = $region36
    $region35: #{my_conv2d.1} parent=5 // pred_region
      %s427 = ssub.s32 %s8, 2
      // Predicated region
      $region37: #{my_conv2d.1} parent=35 // pred_check
        %p428 = pneg %p84
      $region38: #{my_conv2d.1} parent=35 // pred_check_branch
        %430 = sbr.rel (%p428) target = $region40
      $region39: #{my_conv2d.1} parent=35 // pred_region
        %p431 = scmp.lt.s32.totalorder %s14, 1
        %s432 = scalar_select %p431, %s14, 1
        %s433 = smul.addr %s432, 2
        %s434 = smul.addr %s433, 8
        %s435 = scalar_lea.vmem %s2, %s434
      $region40: #{my_conv2d.1} parent=35 // pred_fallthru
        _
    $region36: #{my_conv2d.1} parent=5 // pred_fallthru
      _
  $region6: #{my_conv2d.1} parent=0 // loop_footer
    %s12 = sadd.s32 1, %s8
  $region7: #{my_conv2d.1} parent=0 // loop_footer_branch
    %7 = sbr.rel target = $region3
  $region8: #{my_conv2d.1} parent=0 // loop_exit
    _

</llo_original>
